<compile_context>
chip_gen: v7x
topology: tpu7x:2x2x1
jax: 0.10.0
libtpu: 0.0.40
codegen_flags: <defaults>
</compile_context>

<pallas_src>
import functools
import math

import jax
import jax.numpy as jnp
import numpy as np
from jax.experimental import pallas as pl
from jax.experimental.pallas import tpu as pltpu


def _round_up(x, m):
    return ((x + m - 1) // m) * m


def _bcast_spec(shape):
    nd = len(shape)
    return pl.BlockSpec(shape, lambda *_, _nd=nd: (0,) * _nd)


# ---------------------------------------------------------------------------
# FastRCNNPredictor: fused fc1+relu -> fc2+relu -> [cls_score | bbox_pred]
# K-tiled over the fc1 contraction dim, f32 VMEM accumulator.
# ---------------------------------------------------------------------------
def _fastrcnn_kernel(x_ref, w1_ref, b1_ref, w2_ref, b2_ref, wcb_ref, bcb_ref,
                     o_ref, acc_ref):
    k = pl.program_id(1)

    @pl.when(k == 0)
    def _():
        acc_ref[...] = jnp.zeros_like(acc_ref)

    # fc1 partial product: bf16 MXU inputs, f32 accumulation.
    acc_ref[...] += jnp.dot(x_ref[...], w1_ref[...],
                            preferred_element_type=jnp.float32)

    @pl.when(k == pl.num_programs(1) - 1)
    def _():
        h = jnp.maximum(acc_ref[...] + b1_ref[...], 0.0).astype(jnp.bfloat16)
        h = (jnp.dot(h, w2_ref[...], preferred_element_type=jnp.float32)
             + b2_ref[...])
        h = jnp.maximum(h, 0.0).astype(jnp.bfloat16)
        # cls_score + bbox_pred fused into one lane-dense (128-padded) output.
        o_ref[...] = (jnp.dot(h, wcb_ref[...],
                              preferred_element_type=jnp.float32)
                      + bcb_ref[...])


def fastrcnn_predictor(x_nchw, p, num_classes):
    """x_nchw: (N, C, h, w) RoI-pooled box features -> (scores, bbox_deltas)."""
    N = x_nchw.shape[0]
    D = math.prod(x_nchw.shape[1:])
    Dpad, mid = p['w1'].shape
    out_pad = p['wcb'].shape[1]

    x2d = x_nchw.reshape(N, D).astype(jnp.bfloat16)   # flatten(start_dim=1)
    if Dpad > D:
        x2d = jnp.pad(x2d, ((0, 0), (0, Dpad - D)))
    if N <= 128:
        Npad = _round_up(N, 8)
        tm = Npad
    else:
        Npad = _round_up(N, 128)
        tm = 128
    if Npad > N:
        x2d = jnp.pad(x2d, ((0, Npad - N), (0, 0)))
    tk = 256 if (Dpad % 256 == 0 and Dpad > 256) else min(Dpad, 128)

    out = pl.pallas_call(
        _fastrcnn_kernel,
        grid=(Npad // tm, Dpad // tk),
        in_specs=[
            pl.BlockSpec((tm, tk), lambda i, k: (i, k)),
            pl.BlockSpec((tk, mid), lambda i, k: (k, 0)),
            pl.BlockSpec((1, mid), lambda i, k: (0, 0)),
            pl.BlockSpec((mid, mid), lambda i, k: (0, 0)),
            pl.BlockSpec((1, mid), lambda i, k: (0, 0)),
            pl.BlockSpec((mid, out_pad), lambda i, k: (0, 0)),
            pl.BlockSpec((1, out_pad), lambda i, k: (0, 0)),
        ],
        out_specs=pl.BlockSpec((tm, out_pad), lambda i, k: (i, 0)),
        out_shape=jax.ShapeDtypeStruct((Npad, out_pad), jnp.float32),
        scratch_shapes=[pltpu.VMEM((tm, mid), jnp.float32)],
        compiler_params=pltpu.CompilerParams(
            dimension_semantics=("parallel", "arbitrary")),
    )(x2d, p['w1'], p['b1'], p['w2'], p['b2'], p['wcb'], p['bcb'])

    K = num_classes
    return out[:N, :K], out[:N, K:5 * K]


# ---------------------------------------------------------------------------
# MaskRCNNPredictor: fully fused head, activations stay in VMEM.
# ---------------------------------------------------------------------------
def _mask_head_kernel(*refs, n_conv, H, W):
    x_ref = refs[0]
    conv_w = refs[1:1 + n_conv]
    conv_b = refs[1 + n_conv:1 + 2 * n_conv]
    wdec_ref, bdec_ref, wlog_ref, blog_ref = refs[1 + 2 * n_conv:1 + 2 * n_conv + 4]
    o_ref = refs[-1]

    TB = x_ref.shape[0]
    rows = TB * H * W

    def conv3x3_relu(x, w2d, b):
        # im2col: one (TB*H*W, 9*Cin) x (9*Cin, Cout) matmul per layer.
        cin = x.shape[-1]
        cout = w2d.shape[-1]
        zr = jnp.zeros((TB, 1, W, cin), x.dtype)
        xp = jnp.concatenate([zr, x, zr], axis=1)            # pad H
        zc = jnp.zeros((TB, H + 2, 1, cin), x.dtype)
        xp = jnp.concatenate([zc, xp, zc], axis=2)           # pad W
        cols = [xp[:, dy:dy + H, dx:dx + W, :]
                for dy in range(3) for dx in range(3)]
        patches = jnp.concatenate(cols, axis=-1).reshape(rows, 9 * cin)
        y = jnp.dot(patches, w2d, preferred_element_type=jnp.float32) + b
        return jnp.maximum(y, 0.0).astype(jnp.bfloat16).reshape(TB, H, W, cout)

    x = x_ref[...]
    for i in range(n_conv):
        x = conv3x3_relu(x, conv_w[i][...], conv_b[i][...])

    # ConvTranspose2d(kernel=2, stride=2): one matmul against the tap-flattened
    # (Cin, 4*Cout) weight; spatial interleave handled by the wrapper.
    cin = x.shape[-1]
    wdec = wdec_ref[...]
    c2 = wdec.shape[-1] // 4
    y = jnp.dot(x.reshape(rows, cin), wdec, preferred_element_type=jnp.float32)
    y = jnp.maximum(y + bdec_ref[...], 0.0)

    # 1x1 mask_fcn_logits conv, per deconv tap (lane-dense, class dim padded).
    wlog = wlog_ref[...]
    blog = blog_ref[...]
    kpad = wlog.shape[-1]
    for t in range(4):
        h = y[:, t * c2:(t + 1) * c2].astype(jnp.bfloat16)
        lt = jnp.dot(h, wlog, preferred_element_type=jnp.float32) + blog
        o_ref[:, t // 2, t % 2] = lt.reshape(TB, H, W, kpad)


def maskrcnn_predictor(x_nchw, p, num_classes):
    """x_nchw: (N, Cin, H, W) mask RoI features -> (N, num_classes, 2H, 2W)."""
    N, Cin, H, W = x_nchw.shape
    C0pad = p['fcn_w'][0].shape[0] // 9
    Kpad = p['logit_w'].shape[1]
    n_conv = len(p['fcn_w'])

    x = jnp.transpose(x_nchw, (0, 2, 3, 1)).astype(jnp.bfloat16)   # NCHW -> NHWC
    if C0pad > Cin:
        x = jnp.pad(x, ((0, 0), (0, 0), (0, 0), (0, C0pad - Cin)))
    TB = min(N, 8)
    Npad = _round_up(N, TB)
    if Npad > N:
        x = jnp.pad(x, ((0, Npad - N), (0, 0), (0, 0), (0, 0)))

    args = ([x] + list(p['fcn_w']) + list(p['fcn_b'])
            + [p['deconv_w'], p['deconv_b'], p['logit_w'], p['logit_b']])
    in_specs = [pl.BlockSpec((TB, H, W, C0pad), lambda n: (n, 0, 0, 0))]
    in_specs += [_bcast_spec(a.shape) for a in args[1:]]

    taps = pl.pallas_call(
        functools.partial(_mask_head_kernel, n_conv=n_conv, H=H, W=W),
        grid=(Npad // TB,),
        in_specs=in_specs,
        out_specs=pl.BlockSpec((TB, 2, 2, H, W, Kpad),
                               lambda n: (n, 0, 0, 0, 0, 0)),
        out_shape=jax.ShapeDtypeStruct((Npad, 2, 2, H, W, Kpad), jnp.float32),
        compiler_params=pltpu.CompilerParams(
            dimension_semantics=("parallel",)),
    )(*args)

    # Interleave deconv taps: out[n, 2i+ky, 2j+kx, c] = taps[n, ky, kx, i, j, c]
    y = jnp.transpose(taps, (0, 3, 1, 4, 2, 5)).reshape(Npad, 2 * H, 2 * W, Kpad)
    y = y[:N, :, :, :num_classes]
    return jnp.transpose(y, (0, 3, 1, 2))                          # NHWC -> NCHW


# ---------------------------------------------------------------------------
# Parameter initialization (kernel-ready: padded, im2col / tap-flattened, bf16)
# ---------------------------------------------------------------------------
def init_params(key, *, box_in, box_mid, num_classes,
                mask_in, mask_layers, dim_reduced):
    ks = iter(jax.random.split(key, 64))

    def lin(fan_in, fan_out):
        bound = 1.0 / (fan_in ** 0.5)
        w = jax.random.uniform(next(ks), (fan_in, fan_out), jnp.float32,
                               -bound, bound)
        b = jax.random.uniform(next(ks), (1, fan_out), jnp.float32,
                               -bound, bound)
        return w, b

    def kaiming(shape):
        # conv weight (kh, kw, Cin, Cout): fan_out = kh * kw * Cout
        fan_out = shape[0] * shape[1] * shape[3]
        return ((2.0 / fan_out) ** 0.5
                * jax.random.normal(next(ks), shape, jnp.float32))

    K = num_classes

    # ---- FastRCNNPredictor -------------------------------------------------
    w1, b1 = lin(box_in, box_mid)
    w2, b2 = lin(box_mid, box_mid)
    wc, bc = lin(box_mid, K)
    wb, bb = lin(box_mid, 4 * K)

    Dpad = _round_up(box_in, 128)
    out_pad = _round_up(5 * K, 128)
    w1p = jnp.zeros((Dpad, box_mid), jnp.float32).at[:box_in].set(w1)
    wcb = jnp.zeros((box_mid, out_pad), jnp.float32).at[:, :5 * K].set(
        jnp.concatenate([wc, wb], axis=1))
    bcb = jnp.zeros((1, out_pad), jnp.float32).at[:, :5 * K].set(
        jnp.concatenate([bc, bb], axis=1))
    box = dict(w1=w1p.astype(jnp.bfloat16), b1=b1,
               w2=w2.astype(jnp.bfloat16), b2=b2,
               wcb=wcb.astype(jnp.bfloat16), bcb=bcb)

    # ---- MaskRCNNPredictor -------------------------------------------------
    Kpad = _round_up(K, 128)
    fcn_w_raw, fcn_b_raw, fcn_w, fcn_b = [], [], [], []
    cin = mask_in
    for cout in mask_layers:
        cin_p = _round_up(cin, 128)
        cout_p = _round_up(cout, 128)
        w = kaiming((3, 3, cin, cout))
        b = jnp.zeros((1, cout), jnp.float32)
        wp = (jnp.zeros((3, 3, cin_p, cout_p), jnp.float32)
              .at[:, :, :cin, :cout].set(w))
        fcn_w_raw.append(w)
        fcn_b_raw.append(b)
        fcn_w.append(wp.reshape(9 * cin_p, cout_p).astype(jnp.bfloat16))
        fcn_b.append(jnp.zeros((1, cout_p), jnp.float32).at[:, :cout].set(b))
        cin = cout

    cin_p = _round_up(cin, 128)
    c2_p = _round_up(dim_reduced, 128)
    wdec = kaiming((2, 2, cin, dim_reduced))
    bdec = jnp.zeros((1, dim_reduced), jnp.float32)
    wdec_p = (jnp.zeros((2, 2, cin_p, c2_p), jnp.float32)
              .at[:, :, :cin, :dim_reduced].set(wdec))
    # tap-major flatten: columns ordered (ky, kx, cout)
    wdec_flat = (jnp.transpose(wdec_p, (2, 0, 1, 3))
                 .reshape(cin_p, 4 * c2_p).astype(jnp.bfloat16))
    bdec_flat = jnp.tile(
        jnp.zeros((1, c2_p), jnp.float32).at[:, :dim_reduced].set(bdec), (1, 4))

    wlog = kaiming((1, 1, dim_reduced, K)).reshape(dim_reduced, K)
    blog = jnp.zeros((1, K), jnp.float32)
    wlog_p = (jnp.zeros((c2_p, Kpad), jnp.float32)
              .at[:dim_reduced, :K].set(wlog))
    blog_p = jnp.zeros((1, Kpad), jnp.float32).at[:, :K].set(blog)

    mask = dict(fcn_w=fcn_w, fcn_b=fcn_b,
                deconv_w=wdec_flat, deconv_b=bdec_flat,
                logit_w=wlog_p.astype(jnp.bfloat16), logit_b=blog_p)

    # Raw f32 weights kept for the pure-JAX reference check.
    ref = dict(w1=w1, b1=b1, w2=w2, b2=b2, wc=wc, bc=bc, wb=wb, bb=bb,
               fcn_w=fcn_w_raw, fcn_b=fcn_b_raw,
               deconv_w=wdec, deconv_b=bdec, logit_w=wlog, logit_b=blog)
    return dict(box=box, mask=mask, ref=ref)


# ---------------------------------------------------------------------------
# Pure-JAX references (for correctness checking only)
# ---------------------------------------------------------------------------
def _fastrcnn_ref(x_nchw, r):
    x = x_nchw.reshape(x_nchw.shape[0], -1)
    h = jnp.maximum(x @ r['w1'] + r['b1'], 0.0)
    h = jnp.maximum(h @ r['w2'] + r['b2'], 0.0)
    return h @ r['wc'] + r['bc'], h @ r['wb'] + r['bb']


def _mask_ref(x_nchw, r):
    x = jnp.transpose(x_nchw, (0, 2, 3, 1))
    for w, b in zip(r['fcn_w'], r['fcn_b']):
        x = jax.lax.conv_general_dilated(
            x, w, window_strides=(1, 1), padding='SAME',
            dimension_numbers=('NHWC', 'HWIO', 'NHWC')) + b.reshape(1, 1, 1, -1)
        x = jnp.maximum(x, 0.0)
    N, H, W, _ = x.shape
    c2 = r['deconv_w'].shape[-1]
    out = jnp.zeros((N, 2 * H, 2 * W, c2), jnp.float32)
    for ky in range(2):
        for kx in range(2):
            t = jnp.einsum('nhwc,cd->nhwd', x, r['deconv_w'][ky, kx])
            out = out.at[:, ky::2, kx::2, :].set(t)
    out = jnp.maximum(out + r['deconv_b'].reshape(1, 1, 1, -1), 0.0)
    logits = (jnp.einsum('nhwc,ck->nhwk', out, r['logit_w'])
              + r['logit_b'].reshape(1, 1, 1, -1))
    return jnp.transpose(logits, (0, 3, 1, 2))


# ---------------------------------------------------------------------------
# Driver
# ---------------------------------------------------------------------------
if __name__ == "__main__":
    # Small shapes consistent with the module (scaled down from 512-ch / 1024):
    FEAT_CH = 32          # backbone out_channels (orig 512)
    BOX_RES = 4           # RoIAlign box output size (orig 7)
    MID_CH = 128          # FastRCNN mid_channels (orig 1024)
    NUM_CLASSES = 8
    MASK_LAYERS = (32, 32, 32, 32)   # orig (256,)*4
    DIM_REDUCED = 32                 # orig 256
    N_BOX_ROIS = 16
    N_MASK_ROIS = 4
    MASK_RES = 8          # RoIAlign mask output size (orig 14)

    key = jax.random.PRNGKey(0)
    kp, kb, km = jax.random.split(key, 3)

    params = init_params(
        kp,
        box_in=FEAT_CH * BOX_RES * BOX_RES, box_mid=MID_CH,
        num_classes=NUM_CLASSES,
        mask_in=FEAT_CH, mask_layers=MASK_LAYERS, dim_reduced=DIM_REDUCED)

    # TODO(synk): synthetic RoI-pooled features stand in for
    #             backbone -> Transformer -> RPN -> RoIAlign (not Pallas-able).
    box_feats = jax.random.normal(kb, (N_BOX_ROIS, FEAT_CH, BOX_RES, BOX_RES),
                                  jnp.float32)
    mask_feats = jax.random.normal(km, (N_MASK_ROIS, FEAT_CH, MASK_RES, MASK_RES),
                                   jnp.float32)

    scores, bbox_deltas = fastrcnn_predictor(box_feats, params['box'], NUM_CLASSES)
    mask_logits = maskrcnn_predictor(mask_feats, params['mask'], NUM_CLASSES)
    jax.block_until_ready((scores, bbox_deltas, mask_logits))

    assert scores.shape == (N_BOX_ROIS, NUM_CLASSES)
    assert bbox_deltas.shape == (N_BOX_ROIS, 4 * NUM_CLASSES)
    assert mask_logits.shape == (N_MASK_ROIS, NUM_CLASSES, 2 * MASK_RES, 2 * MASK_RES)

    # Correctness vs pure-JAX reference (loose tolerance: kernels use bf16 MXU
    # inputs with f32 accumulation).
    s_ref, b_ref = _fastrcnn_ref(box_feats, params['ref'])
    m_ref = _mask_ref(mask_feats, params['ref'])
    np.testing.assert_allclose(np.asarray(scores), np.asarray(s_ref),
                               rtol=0.1, atol=0.1)
    np.testing.assert_allclose(np.asarray(bbox_deltas), np.asarray(b_ref),
                               rtol=0.1, atol=0.1)
    np.testing.assert_allclose(np.asarray(mask_logits), np.asarray(m_ref),
                               rtol=0.1, atol=0.1)

    print("KERNEL_OK")
</pallas_src>

<mosaic_0001>
module attributes {stable_mosaic.version = 11 : i64} {
  func.func @_fastrcnn_kernel(%arg0: i32, %arg1: i32, %arg2: memref<16x256xbf16, #tpu.memory_space<vmem>>, %arg3: memref<256x128xbf16, #tpu.memory_space<vmem>>, %arg4: memref<1x128xf32, #tpu.memory_space<vmem>>, %arg5: memref<128x128xbf16, #tpu.memory_space<vmem>>, %arg6: memref<1x128xf32, #tpu.memory_space<vmem>>, %arg7: memref<128x128xbf16, #tpu.memory_space<vmem>>, %arg8: memref<1x128xf32, #tpu.memory_space<vmem>>, %arg9: memref<16x128xf32, #tpu.memory_space<vmem>>, %arg10: memref<16x128xf32, #tpu.memory_space<vmem>>) attributes {dimension_semantics = [#tpu.dimension_semantics<parallel>, #tpu.dimension_semantics<arbitrary>], iteration_bounds = array<i64: 1, 2>, scalar_prefetch = 0 : i64, scratch_operands = 1 : i64, tpu.core_type = #tpu.core_type<tc>, window_params = [{transform_indices = @transform_0, window_bounds = array<i64: 16, 256>}, {transform_indices = @transform_1, window_bounds = array<i64: 256, 128>}, {pipeline_mode = #tpu.pipeline_mode<synchronous>, transform_indices = @transform_2, window_bounds = array<i64: 1, 128>}, {pipeline_mode = #tpu.pipeline_mode<synchronous>, transform_indices = @transform_3, window_bounds = array<i64: 128, 128>}, {pipeline_mode = #tpu.pipeline_mode<synchronous>, transform_indices = @transform_4, window_bounds = array<i64: 1, 128>}, {pipeline_mode = #tpu.pipeline_mode<synchronous>, transform_indices = @transform_5, window_bounds = array<i64: 128, 128>}, {pipeline_mode = #tpu.pipeline_mode<synchronous>, transform_indices = @transform_6, window_bounds = array<i64: 1, 128>}, {transform_indices = @transform_7, window_bounds = array<i64: 16, 128>}]} {
    %c0_i32 = arith.constant 0 : i32
    %0 = arith.cmpi eq, %arg1, %c0_i32 : i32
    %1 = arith.extui %0 : i1 to i32
    %c0_i32_0 = arith.constant 0 : i32
    %2 = arith.cmpi ne, %1, %c0_i32_0 : i32
    scf.if %2 {
      %cst_9 = arith.constant 0.000000e+00 : f32
      %12 = vector.broadcast %cst_9 : f32 to vector<16x128xf32>
      %c0_10 = arith.constant 0 : index
      %c0_11 = arith.constant 0 : index
      %13 = vector.load %arg10[%c0_10, %c0_11] : memref<16x128xf32, #tpu.memory_space<vmem>>, vector<16x128xf32>
      tpu.vector_store %arg10[%c0_10, %c0_11], %12 {strides = array<i32>} : memref<16x128xf32, #tpu.memory_space<vmem>>, vector<16x128xf32>,
    } else {
    }
    %c0 = arith.constant 0 : index
    %c0_1 = arith.constant 0 : index
    %3 = vector.load %arg10[%c0, %c0_1] : memref<16x128xf32, #tpu.memory_space<vmem>>, vector<16x128xf32>
    %c0_2 = arith.constant 0 : index
    %c0_3 = arith.constant 0 : index
    %4 = vector.load %arg2[%c0_2, %c0_3] : memref<16x256xbf16, #tpu.memory_space<vmem>>, vector<16x256xbf16>
    %c0_4 = arith.constant 0 : index
    %c0_5 = arith.constant 0 : index
    %5 = vector.load %arg3[%c0_4, %c0_5] : memref<256x128xbf16, #tpu.memory_space<vmem>>, vector<256x128xbf16>
    %cst = arith.constant dense<0.000000e+00> : vector<16x128xf32>
    %6 = tpu.matmul %4, %5, %cst {dimension_numbers = #tpu.dot_dimension_numbers<[1], [0], [0], [1], [0, 0, 1, 1], [], []>} : vector<16x256xbf16>, vector<256x128xbf16>, vector<16x128xf32> -> vector<16x128xf32>
    %7 = arith.addf %3, %6 : vector<16x128xf32>
    %c0_6 = arith.constant 0 : index
    %c0_7 = arith.constant 0 : index
    %8 = vector.load %arg10[%c0_6, %c0_7] : memref<16x128xf32, #tpu.memory_space<vmem>>, vector<16x128xf32>
    tpu.vector_store %arg10[%c0_6, %c0_7], %7 {strides = array<i32>} : memref<16x128xf32, #tpu.memory_space<vmem>>, vector<16x128xf32>,
    %c1_i32 = arith.constant 1 : i32
    %9 = arith.cmpi eq, %arg1, %c1_i32 : i32
    %10 = arith.extui %9 : i1 to i32
    %c0_i32_8 = arith.constant 0 : i32
    %11 = arith.cmpi ne, %10, %c0_i32_8 : i32
    scf.if %11 {
      %c0_9 = arith.constant 0 : index
      %c0_10 = arith.constant 0 : index
      %12 = vector.load %arg10[%c0_9, %c0_10] : memref<16x128xf32, #tpu.memory_space<vmem>>, vector<16x128xf32>
      %c0_11 = arith.constant 0 : index
      %c0_12 = arith.constant 0 : index
      %13 = vector.load %arg4[%c0_11, %c0_12] : memref<1x128xf32, #tpu.memory_space<vmem>>, vector<1x128xf32>
      %14 = vector.broadcast %13 : vector<1x128xf32> to vector<16x128xf32>
      %15 = arith.addf %12, %14 : vector<16x128xf32>
      %cst_13 = arith.constant 0.000000e+00 : f32
      %16 = vector.broadcast %cst_13 : f32 to vector<16x128xf32>
      %17 = arith.maximumf %15, %16 : vector<16x128xf32>
      %18 = arith.truncf %17 : vector<16x128xf32> to vector<16x128xbf16>
      %c0_14 = arith.constant 0 : index
      %c0_15 = arith.constant 0 : index
      %19 = vector.load %arg5[%c0_14, %c0_15] : memref<128x128xbf16, #tpu.memory_space<vmem>>, vector<128x128xbf16>
      %cst_16 = arith.constant dense<0.000000e+00> : vector<16x128xf32>
      %20 = tpu.matmul %18, %19, %cst_16 {dimension_numbers = #tpu.dot_dimension_numbers<[1], [0], [0], [1], [0, 0, 1, 1], [], []>} : vector<16x128xbf16>, vector<128x128xbf16>, vector<16x128xf32> -> vector<16x128xf32>
      %c0_17 = arith.constant 0 : index
      %c0_18 = arith.constant 0 : index
      %21 = vector.load %arg6[%c0_17, %c0_18] : memref<1x128xf32, #tpu.memory_space<vmem>>, vector<1x128xf32>
      %22 = vector.broadcast %21 : vector<1x128xf32> to vector<16x128xf32>
      %23 = arith.addf %20, %22 : vector<16x128xf32>
      %cst_19 = arith.constant 0.000000e+00 : f32
      %24 = vector.broadcast %cst_19 : f32 to vector<16x128xf32>
      %25 = arith.maximumf %23, %24 : vector<16x128xf32>
      %26 = arith.truncf %25 : vector<16x128xf32> to vector<16x128xbf16>
      %c0_20 = arith.constant 0 : index
      %c0_21 = arith.constant 0 : index
      %27 = vector.load %arg7[%c0_20, %c0_21] : memref<128x128xbf16, #tpu.memory_space<vmem>>, vector<128x128xbf16>
      %cst_22 = arith.constant dense<0.000000e+00> : vector<16x128xf32>
      %28 = tpu.matmul %26, %27, %cst_22 {dimension_numbers = #tpu.dot_dimension_numbers<[1], [0], [0], [1], [0, 0, 1, 1], [], []>} : vector<16x128xbf16>, vector<128x128xbf16>, vector<16x128xf32> -> vector<16x128xf32>
      %c0_23 = arith.constant 0 : index
      %c0_24 = arith.constant 0 : index
      %29 = vector.load %arg8[%c0_23, %c0_24] : memref<1x128xf32, #tpu.memory_space<vmem>>, vector<1x128xf32>
      %30 = vector.broadcast %29 : vector<1x128xf32> to vector<16x128xf32>
      %31 = arith.addf %28, %30 : vector<16x128xf32>
      %c0_25 = arith.constant 0 : index
      %c0_26 = arith.constant 0 : index
      %32 = vector.load %arg9[%c0_25, %c0_26] : memref<16x128xf32, #tpu.memory_space<vmem>>, vector<16x128xf32>
      tpu.vector_store %arg9[%c0_25, %c0_26], %31 {strides = array<i32>} : memref<16x128xf32, #tpu.memory_space<vmem>>, vector<16x128xf32>,
    } else {
    }
    return
  }
  func.func @transform_0(%arg0: i32, %arg1: i32) -> (i32, i32) {
    %c0_i32 = arith.constant 0 : i32
    return %arg0, %arg1 : i32, i32
  }
  func.func @transform_1(%arg0: i32, %arg1: i32) -> (i32, i32) {
    %c0_i32 = arith.constant 0 : i32
    %c0_i32_0 = arith.constant 0 : i32
    return %arg1, %c0_i32 : i32, i32
  }
  func.func @transform_2(%arg0: i32, %arg1: i32) -> (i32, i32) {
    %c0_i32 = arith.constant 0 : i32
    %c0_i32_0 = arith.constant 0 : i32
    %c0_i32_1 = arith.constant 0 : i32
    return %c0_i32, %c0_i32_0 : i32, i32
  }
  func.func @transform_3(%arg0: i32, %arg1: i32) -> (i32, i32) {
    %c0_i32 = arith.constant 0 : i32
    %c0_i32_0 = arith.constant 0 : i32
    %c0_i32_1 = arith.constant 0 : i32
    return %c0_i32, %c0_i32_0 : i32, i32
  }
  func.func @transform_4(%arg0: i32, %arg1: i32) -> (i32, i32) {
    %c0_i32 = arith.constant 0 : i32
    %c0_i32_0 = arith.constant 0 : i32
    %c0_i32_1 = arith.constant 0 : i32
    return %c0_i32, %c0_i32_0 : i32, i32
  }
  func.func @transform_5(%arg0: i32, %arg1: i32) -> (i32, i32) {
    %c0_i32 = arith.constant 0 : i32
    %c0_i32_0 = arith.constant 0 : i32
    %c0_i32_1 = arith.constant 0 : i32
    return %c0_i32, %c0_i32_0 : i32, i32
  }
  func.func @transform_6(%arg0: i32, %arg1: i32) -> (i32, i32) {
    %c0_i32 = arith.constant 0 : i32
    %c0_i32_0 = arith.constant 0 : i32
    %c0_i32_1 = arith.constant 0 : i32
    return %c0_i32, %c0_i32_0 : i32, i32
  }
  func.func @transform_7(%arg0: i32, %arg1: i32) -> (i32, i32) {
    %c0_i32 = arith.constant 0 : i32
    %c0_i32_0 = arith.constant 0 : i32
    return %arg0, %c0_i32 : i32, i32
  }
}

</mosaic_0001>

<llo_original>
// kernel: tpu_custom_call.1
$region0: #{tpu_custom_call.1}
  #allocation0 [shape = 'u32[]', space=smem, size = 0x4, offset = 0x4, fixed_abs, tag = 'smem constant byte address 0x4 - core index']
  #allocation1 [shape = 'u32[144,128]{1,0:T(1,128)}', space=vmem, size = 0x12000, scoped, tag = 'internal scratch']
  #allocation2 [shape = 'f32[16,128]{1,0:T(8,128)}', space=vmem, size = 0x2000, scoped, tag = 'scratch operand']
  %s0 = inlined_call_operand.hbm [shape: bf16[16,512], index: 0, kind: input, shape index: {}]
  %s1 = inlined_call_operand.hbm [shape: bf16[512,128], index: 1, kind: input, shape index: {}]
  %s2 = inlined_call_operand.vmem [shape: f32[1,128], index: 2, kind: input, shape index: {}]
  %s3 = inlined_call_operand.hbm [shape: bf16[128,128], index: 3, kind: input, shape index: {}]
  %s4 = inlined_call_operand.vmem [shape: f32[1,128], index: 4, kind: input, shape index: {}]
  %s5 = inlined_call_operand.hbm [shape: bf16[128,128], index: 5, kind: input, shape index: {}]
  %s6 = inlined_call_operand.vmem [shape: f32[1,128], index: 6, kind: input, shape index: {}]
  %s7 = inlined_call_operand.hbm [shape: f32[16,128], index: 7, kind: output, shape index: {}]
  %s8 = sld [smem:[#allocation0]]
  $region85: #{tpu_custom_call.1} parent=0
    _
  %s10 = ssub.s32 1, %s8
  %s11 = scalar_select 0, %s10, %s8
  $region1: #{tpu_custom_call.1} parent=0
    #allocation3 [shape = 'u8[16384]{0}', space=vmem, size = 0x4000, scoped, tag = 'input window, operand 0']
    #allocation4 [shape = 's32[2]{0}', space=sflag, size = 0x8, scoped, tag = 'scoped memory for tpu_custom_call.1']
    #allocation5 [shape = 's32[2]{0}', space=sflag, size = 0x8, scoped, tag = 'scoped memory for tpu_custom_call.1']
    #allocation6 [shape = 'u8[131072]{0}', space=vmem, size = 0x20000, scoped, tag = 'input window, operand 1']
    #allocation7 [shape = 's32[2]{0}', space=sflag, size = 0x8, scoped, tag = 'scoped memory for tpu_custom_call.1']
    #allocation8 [shape = 'u8[32768]{0}', space=vmem, size = 0x8000, scoped, tag = 'input window, operand 3, single buffered']
    #allocation9 [shape = 'u8[32768]{0}', space=vmem, size = 0x8000, scoped, tag = 'input window, operand 5, single buffered']
    #allocation10 [shape = 's32[1]{0}', space=sflag, size = 0x4, scoped, tag = 'scoped memory for tpu_custom_call.1']
    #allocation11 [shape = 'u8[8192]{0}', space=vmem, size = 0x2000, scoped, tag = 'output window, operand 0, single buffered']
    %12 = vsyncpa [#allocation4], 0
    %s13 = scalar_lea.sflag [#allocation4], 1
    %14 = vsyncpa %s13, 0
    %15 = vsyncpa [#allocation7], 0
    %s16 = scalar_lea.sflag [#allocation7], 1
    %17 = vsyncpa %s16, 0
    %18 = vsyncpa [#allocation10], 0
    %19 = vsyncpa [#allocation5], 0
    loop: start=0, step=1, limit=4
    $region2: #{tpu_custom_call.1} parent=1 // loop_pre_header
      _
    $region3: #{tpu_custom_call.1} parent=1 // loop_header
      %s21 = sphi 0, %s25
      %p22 = scmp.ge.s32.totalorder %s21, 4
      %s28 = sphi 0, %s40
      %s29 = sphi 0, %s36
      %s30 = sphi 0, %s28
      %s31 = sphi 0, %s29
      %s32 = sphi 0, %s30
      %s33 = sphi 0, %s31
      %s45 = sphi 0, %s47
      %s48 = sphi 0, %s45
      %s49 = sphi 0, %s48
      %s65 = sphi 0, %s49
      %s71 = sphi 0, %s73
      %s74 = sphi 0, %s71
      %s75 = sphi 0, %s74
      %s91 = sphi 0, %s75
      %s95 = sphi 0, %s95
      %s97 = sphi 0, %s95
      %s98 = sphi 0, %s97
      %s112 = sphi 0, %s98
      %s116 = sphi 0, %s116
      %s118 = sphi 0, %s116
      %s119 = sphi 0, %s118
      %s133 = sphi 0, %s119
      %s137 = sphi 0, %s137
      %s139 = sphi 0, %s137
      %s140 = sphi 0, %s139
      %s154 = sphi 0, %s140
      %s158 = sphi 0, %s158
      %s160 = sphi 0, %s158
      %s161 = sphi 0, %s160
      %s175 = sphi 0, %s161
      %s179 = sphi 0, %s179
      %s181 = sphi 0, %s179
      %s182 = sphi 0, %s181
      %s196 = sphi 0, %s182
      %s202 = sphi 0, %s204
      %s205 = sphi 0, %s202
      %s206 = sphi 0, %s205
      %s222 = sphi 0, %s206
    $region4: #{tpu_custom_call.1} parent=1 // loop_header_branch
      %24 = sbr.rel (%p22) target = $region8
    $region5: #{tpu_custom_call.1} parent=1 // loop_body
      %s26 = ssub.s32 %s21, 1
      %s27 = ssub.s32 %s21, 2
      %s34 = sadd.s32 1, %s29
      %p35 = scmp.ge.s32.totalorder %s34, 2
      %s36 = scalar_select %p35, 0, %s34
      %s37 = sadd.s32 1, %s28
      %s38 = scalar_select %p35, %s37, %s28
      %p39 = scmp.ge.s32.totalorder %s38, 1
      %s40 = scalar_select %p39, 0, %s38
      %s41 = ssub.s32 %s28, %s40
      %s42 = ssub.s32 %s29, %s36
      %s43 = sor.u32 %s41, %s42
      %p44 = scmp.eq.s32.totalorder %s43, 0
      %s46 = sadd.s32 %s45, 1
      %s47 = scalar_select %p44, %s45, %s46
      %p50 = pneg %p44
      %p51 = scmp.eq.s32.totalorder %s21, 1
      %p52 = por %p50, %p51
      %p53 = scmp.ne.s32.totalorder %s45, %s48
      %p54 = scmp.eq.s32.totalorder %s21, 0
      %p55 = por %p53, %p54
      %p56 = scmp.ne.s32.totalorder %s45, %s48
      %p57 = scmp.eq.s32.totalorder %s26, 1
      %p58 = por %p56, %p57
      %p59 = scmp.ne.s32.totalorder %s48, %s49
      %p60 = scmp.eq.s32.totalorder %s26, 0
      %p61 = por %p59, %p60
      %p62 = scmp.ne.s32.totalorder %s48, %s49
      %p63 = scmp.eq.s32.totalorder %s27, 1
      %p64 = por %p62, %p63
      %p66 = scmp.ne.s32.totalorder %s49, %s65
      %p67 = scmp.eq.s32.totalorder %s27, 0
      %p68 = por %p66, %p67
      %s69 = ssub.s32 %s29, %s36
      %p70 = scmp.eq.s32.totalorder %s69, 0
      %s72 = sadd.s32 %s71, 1
      %s73 = scalar_select %p70, %s71, %s72
      %p76 = pneg %p70
      %p77 = scmp.eq.s32.totalorder %s21, 1
      %p78 = por %p76, %p77
      %p79 = scmp.ne.s32.totalorder %s71, %s74
      %p80 = scmp.eq.s32.totalorder %s21, 0
      %p81 = por %p79, %p80
      %p82 = scmp.ne.s32.totalorder %s71, %s74
      %p83 = scmp.eq.s32.totalorder %s26, 1
      %p84 = por %p82, %p83
      %p85 = scmp.ne.s32.totalorder %s74, %s75
      %p86 = scmp.eq.s32.totalorder %s26, 0
      %p87 = por %p85, %p86
      %p88 = scmp.ne.s32.totalorder %s74, %s75
      %p89 = scmp.eq.s32.totalorder %s27, 1
      %p90 = por %p88, %p89
      %p92 = scmp.ne.s32.totalorder %s75, %s91
      %p93 = scmp.eq.s32.totalorder %s27, 0
      %p94 = por %p92, %p93
      %s96 = sadd.s32 %s95, 1
      %p99 = scmp.eq.s32.totalorder %s21, 1
      %p100 = scmp.ne.s32.totalorder %s95, %s97
      %p101 = scmp.eq.s32.totalorder %s21, 0
      %p102 = por %p100, %p101
      %p103 = scmp.ne.s32.totalorder %s95, %s97
      %p104 = scmp.eq.s32.totalorder %s26, 1
      %p105 = por %p103, %p104
      %p106 = scmp.ne.s32.totalorder %s97, %s98
      %p107 = scmp.eq.s32.totalorder %s26, 0
      %p108 = por %p106, %p107
      %p109 = scmp.ne.s32.totalorder %s97, %s98
      %p110 = scmp.eq.s32.totalorder %s27, 1
      %p111 = por %p109, %p110
      %p113 = scmp.ne.s32.totalorder %s98, %s112
      %p114 = scmp.eq.s32.totalorder %s27, 0
      %p115 = por %p113, %p114
      %s117 = sadd.s32 %s116, 1
      %p120 = scmp.eq.s32.totalorder %s21, 1
      %p121 = scmp.ne.s32.totalorder %s116, %s118
      %p122 = scmp.eq.s32.totalorder %s21, 0
      %p123 = por %p121, %p122
      %p124 = scmp.ne.s32.totalorder %s116, %s118
      %p125 = scmp.eq.s32.totalorder %s26, 1
      %p126 = por %p124, %p125
      %p127 = scmp.ne.s32.totalorder %s118, %s119
      %p128 = scmp.eq.s32.totalorder %s26, 0
      %p129 = por %p127, %p128
      %p130 = scmp.ne.s32.totalorder %s118, %s119
      %p131 = scmp.eq.s32.totalorder %s27, 1
      %p132 = por %p130, %p131
      %p134 = scmp.ne.s32.totalorder %s119, %s133
      %p135 = scmp.eq.s32.totalorder %s27, 0
      %p136 = por %p134, %p135
      %s138 = sadd.s32 %s137, 1
      %p141 = scmp.eq.s32.totalorder %s21, 1
      %p142 = scmp.ne.s32.totalorder %s137, %s139
      %p143 = scmp.eq.s32.totalorder %s21, 0
      %p144 = por %p142, %p143
      %p145 = scmp.ne.s32.totalorder %s137, %s139
      %p146 = scmp.eq.s32.totalorder %s26, 1
      %p147 = por %p145, %p146
      %p148 = scmp.ne.s32.totalorder %s139, %s140
      %p149 = scmp.eq.s32.totalorder %s26, 0
      %p150 = por %p148, %p149
      %p151 = scmp.ne.s32.totalorder %s139, %s140
      %p152 = scmp.eq.s32.totalorder %s27, 1
      %p153 = por %p151, %p152
      %p155 = scmp.ne.s32.totalorder %s140, %s154
      %p156 = scmp.eq.s32.totalorder %s27, 0
      %p157 = por %p155, %p156
      %s159 = sadd.s32 %s158, 1
      %p162 = scmp.eq.s32.totalorder %s21, 1
      %p163 = scmp.ne.s32.totalorder %s158, %s160
      %p164 = scmp.eq.s32.totalorder %s21, 0
      %p165 = por %p163, %p164
      %p166 = scmp.ne.s32.totalorder %s158, %s160
      %p167 = scmp.eq.s32.totalorder %s26, 1
      %p168 = por %p166, %p167
      %p169 = scmp.ne.s32.totalorder %s160, %s161
      %p170 = scmp.eq.s32.totalorder %s26, 0
      %p171 = por %p169, %p170
      %p172 = scmp.ne.s32.totalorder %s160, %s161
      %p173 = scmp.eq.s32.totalorder %s27, 1
      %p174 = por %p172, %p173
      %p176 = scmp.ne.s32.totalorder %s161, %s175
      %p177 = scmp.eq.s32.totalorder %s27, 0
      %p178 = por %p176, %p177
      %s180 = sadd.s32 %s179, 1
      %p183 = scmp.eq.s32.totalorder %s21, 1
      %p184 = scmp.ne.s32.totalorder %s179, %s181
      %p185 = scmp.eq.s32.totalorder %s21, 0
      %p186 = por %p184, %p185
      %p187 = scmp.ne.s32.totalorder %s179, %s181
      %p188 = scmp.eq.s32.totalorder %s26, 1
      %p189 = por %p187, %p188
      %p190 = scmp.ne.s32.totalorder %s181, %s182
      %p191 = scmp.eq.s32.totalorder %s26, 0
      %p192 = por %p190, %p191
      %p193 = scmp.ne.s32.totalorder %s181, %s182
      %p194 = scmp.eq.s32.totalorder %s27, 1
      %p195 = por %p193, %p194
      %p197 = scmp.ne.s32.totalorder %s182, %s196
      %p198 = scmp.eq.s32.totalorder %s27, 0
      %p199 = por %p197, %p198
      %s200 = ssub.s32 %s28, %s40
      %p201 = scmp.eq.s32.totalorder %s200, 0
      %s203 = sadd.s32 %s202, 1
      %s204 = scalar_select %p201, %s202, %s203
      %p207 = pneg %p201
      %p208 = scmp.eq.s32.totalorder %s21, 1
      %p209 = por %p207, %p208
      %p210 = scmp.ne.s32.totalorder %s202, %s205
      %p211 = scmp.eq.s32.totalorder %s21, 0
      %p212 = por %p210, %p211
      %p213 = scmp.ne.s32.totalorder %s202, %s205
      %p214 = scmp.eq.s32.totalorder %s26, 1
      %p215 = por %p213, %p214
      %p216 = scmp.ne.s32.totalorder %s205, %s206
      %p217 = scmp.eq.s32.totalorder %s26, 0
      %p218 = por %p216, %p217
      %p219 = scmp.ne.s32.totalorder %s205, %s206
      %p220 = scmp.eq.s32.totalorder %s27, 1
      %p221 = por %p219, %p220
      %p223 = scmp.ne.s32.totalorder %s206, %s222
      %p224 = scmp.eq.s32.totalorder %s27, 0
      %p225 = por %p223, %p224
      %p226 = scmp.le.s32.totalorder 1, %s21
      %p227 = scmp.lt.s32.totalorder %s21, 3
      %p228 = pnand %p226, %p227
      %p229 = pneg %p228
      // Predicated region
      $region9: #{tpu_custom_call.1} parent=5 // pred_check
        _
      $region10: #{tpu_custom_call.1} parent=5 // pred_check_branch
        %231 = sbr.rel (%p228) target = $region12
      $region11: #{tpu_custom_call.1} parent=5 // pred_region
        %s232 = ssub.s32 %s21, 1
        // Predicated region
        $region13: #{tpu_custom_call.1} parent=11 // pred_check
          %p233 = pneg %p108
        $region14: #{tpu_custom_call.1} parent=11 // pred_check_branch
          %235 = sbr.rel (%p233) target = $region16
        $region15: #{tpu_custom_call.1} parent=11 // pred_region
          _
        $region16: #{tpu_custom_call.1} parent=11 // pred_fallthru
          _
        // Predicated region
        $region17: #{tpu_custom_call.1} parent=11 // pred_check
          %p236 = pneg %p129
        $region18: #{tpu_custom_call.1} parent=11 // pred_check_branch
          %238 = sbr.rel (%p236) target = $region20
        $region19: #{tpu_custom_call.1} parent=11 // pred_region
          %s240 = ssub.s32 1024, 1024
          %241 = vsyncadd [#allocation7], %s240
          %s242 = sshll.u32 [#allocation8], 4
          %s243 = int_to_ptr.vmem [resolvable:$true] %s242
          %248 = dma.hbm_to_vmem [thread:$0]  %s3, 1024, %s243, [#allocation7], 64, 64, 4
        $region20: #{tpu_custom_call.1} parent=11 // pred_fallthru
          _
        // Predicated region
        $region21: #{tpu_custom_call.1} parent=11 // pred_check
          %p249 = pneg %p150
        $region22: #{tpu_custom_call.1} parent=11 // pred_check_branch
          %251 = sbr.rel (%p249) target = $region24
        $region23: #{tpu_custom_call.1} parent=11 // pred_region
          _
        $region24: #{tpu_custom_call.1} parent=11 // pred_fallthru
          _
        // Predicated region
        $region25: #{tpu_custom_call.1} parent=11 // pred_check
          %p252 = pneg %p171
        $region26: #{tpu_custom_call.1} parent=11 // pred_check_branch
          %254 = sbr.rel (%p252) target = $region28
        $region27: #{tpu_custom_call.1} parent=11 // pred_region
          %s256 = ssub.s32 1024, 1024
          %257 = vsyncadd [#allocation10], %s256
          %s258 = sshll.u32 [#allocation9], 4
          %s259 = int_to_ptr.vmem [resolvable:$true] %s258
          %264 = dma.hbm_to_vmem [thread:$0]  %s5, 1024, %s259, [#allocation10], 64, 64, 4
        $region28: #{tpu_custom_call.1} parent=11 // pred_fallthru
          _
        // Predicated region
        $region29: #{tpu_custom_call.1} parent=11 // pred_check
          %p265 = pneg %p192
        $region30: #{tpu_custom_call.1} parent=11 // pred_check_branch
          %267 = sbr.rel (%p265) target = $region32
        $region31: #{tpu_custom_call.1} parent=11 // pred_region
          _
        $region32: #{tpu_custom_call.1} parent=11 // pred_fallthru
          _
      $region12: #{tpu_custom_call.1} parent=5 // pred_fallthru
        _
      %p268 = scmp.lt.s32.totalorder %s21, 2
      // Predicated region
      $region33: #{tpu_custom_call.1} parent=5 // pred_check
        %p269 = pneg %p268
      $region34: #{tpu_custom_call.1} parent=5 // pred_check_branch
        %271 = sbr.rel (%p269) target = $region36
      $region35: #{tpu_custom_call.1} parent=5 // pred_region
        // Predicated region
        $region37: #{tpu_custom_call.1} parent=35 // pred_check
          %p272 = pneg %p55
        $region38: #{tpu_custom_call.1} parent=35 // pred_check_branch
          %274 = sbr.rel (%p272) target = $region40
        $region39: #{tpu_custom_call.1} parent=35 // pred_region
          %s275 = sand.u32 %s45, 1
          %s276 = scalar_lea.sflag [#allocation4], %s275
          %s277 = sand.u32 %s45, 1
          %s278 = smul.addr %s277, 16
          %s279 = scalar_lea.vmem [#allocation3], %s278
          %s280 = smul.u32 2, %s28
          %s281 = smul.u32 2, %s29
          %s283 = ssub.s32 256, 256
          %284 = vsyncadd %s276, %s283
          %s285 = smul.addr %s280, 4
          %s286 = sadd.s32 %s281, %s285
          %s287 = smul.addr %s286, 64
          %s288 = scalar_lea.hbm %s0, %s287
          %s289 = sshll.u32 %s279, 4
          %s290 = int_to_ptr.vmem [resolvable:$true] %s289
          %295 = dma.hbm_to_vmem [thread:$0]  %s288, 256, %s290, %s276, 256, 128, 8
        $region40: #{tpu_custom_call.1} parent=35 // pred_fallthru
          _
        // Predicated region
        $region41: #{tpu_custom_call.1} parent=35 // pred_check
          %p296 = pneg %p81
        $region42: #{tpu_custom_call.1} parent=35 // pred_check_branch
          %298 = sbr.rel (%p296) target = $region44
        $region43: #{tpu_custom_call.1} parent=35 // pred_region
          %s299 = sand.u32 %s21, 1
          %s300 = scalar_lea.sflag [#allocation7], %s299
          %s301 = sand.u32 %s71, 1
          %s302 = smul.addr %s301, 128
          %s303 = scalar_lea.vmem [#allocation6], %s302
          %s304 = smul.u32 32, %s29
          %s306 = ssub.s32 2048, 2048
          %307 = vsyncadd %s300, %s306
          %s308 = smul.addr %s304, 64
          %s309 = scalar_lea.hbm %s1, %s308
          %s310 = sshll.u32 %s303, 4
          %s311 = int_to_ptr.vmem [resolvable:$true] %s310
          %316 = dma.hbm_to_vmem [thread:$0]  %s309, 2048, %s311, %s300, 64, 64, 4
        $region44: #{tpu_custom_call.1} parent=35 // pred_fallthru
          _
      $region36: #{tpu_custom_call.1} parent=5 // pred_fallthru
        _
      %p317 = scmp.le.s32.totalorder 1, %s21
      %p318 = scmp.lt.s32.totalorder %s21, 3
      %p319 = pnand %p317, %p318
      %p320 = pneg %p319
      // Predicated region
      $region45: #{tpu_custom_call.1} parent=5 // pred_check
        _
      $region46: #{tpu_custom_call.1} parent=5 // pred_check_branch
        %322 = sbr.rel (%p319) target = $region48
      $region47: #{tpu_custom_call.1} parent=5 // pred_region
        %s323 = ssub.s32 %s21, 1
        %s324 = sand.u32 %s48, 1
        %s325 = scalar_lea.sflag [#allocation4], %s324
        %s326 = sand.u32 %s48, 1
        %s327 = smul.addr %s326, 16
        %s328 = scalar_lea.vmem [#allocation3], %s327
        // Predicated region
        $region49: #{tpu_custom_call.1} parent=47 // pred_check
          %p329 = pneg %p61
        $region50: #{tpu_custom_call.1} parent=47 // pred_check_branch
          %331 = sbr.rel (%p329) target = $region52
        $region51: #{tpu_custom_call.1} parent=47 // pred_region
          %332 = dma.done %s325, 256
        $region52: #{tpu_custom_call.1} parent=47 // pred_fallthru
          _
        %s333 = sand.u32 %s26, 1
        %s334 = scalar_lea.sflag [#allocation7], %s333
        %s335 = sand.u32 %s74, 1
        %s336 = smul.addr %s335, 128
        %s337 = scalar_lea.vmem [#allocation6], %s336
        // Predicated region
        $region53: #{tpu_custom_call.1} parent=47 // pred_check
          %p338 = pneg %p87
        $region54: #{tpu_custom_call.1} parent=47 // pred_check_branch
          %340 = sbr.rel (%p338) target = $region56
        $region55: #{tpu_custom_call.1} parent=47 // pred_region
          %341 = dma.done %s334, 2048
        $region56: #{tpu_custom_call.1} parent=47 // pred_fallthru
          _
        // Predicated region
        $region57: #{tpu_custom_call.1} parent=47 // pred_check
          %p342 = pneg %p129
        $region58: #{tpu_custom_call.1} parent=47 // pred_check_branch
          %344 = sbr.rel (%p342) target = $region60
        $region59: #{tpu_custom_call.1} parent=47 // pred_region
          %345 = dma.done [#allocation7], 1024
        $region60: #{tpu_custom_call.1} parent=47 // pred_fallthru
          _
        // Predicated region
        $region61: #{tpu_custom_call.1} parent=47 // pred_check
          %p346 = pneg %p171
        $region62: #{tpu_custom_call.1} parent=47 // pred_check_branch
          %348 = sbr.rel (%p346) target = $region64
        $region63: #{tpu_custom_call.1} parent=47 // pred_region
          %349 = dma.done [#allocation10], 1024
        $region64: #{tpu_custom_call.1} parent=47 // pred_fallthru
          _
        %s350 = sand.u32 %s48, 1
        %s351 = scalar_lea.sflag [#allocation4], %s350
        %s352 = sand.u32 %s48, 1
        %s353 = smul.addr %s352, 16
        %s354 = scalar_lea.vmem [#allocation3], %s353
        %p355 = pneg %p61
        %p356 = pneg %p58
        %s357 = sand.u32 %s26, 1
        %s358 = scalar_lea.sflag [#allocation7], %s357
        %s359 = sand.u32 %s74, 1
        %s360 = smul.addr %s359, 128
        %s361 = scalar_lea.vmem [#allocation6], %s360
        %p362 = pneg %p87
        %p363 = pneg %p84
        %p364 = pneg %p108
        %p365 = pneg %p105
        %p366 = pneg %p129
        %p367 = pneg %p126
        %p368 = pneg %p150
        %p369 = pneg %p147
        %p370 = pneg %p171
        %p371 = pneg %p168
        %p372 = pneg %p192
        %p373 = pneg %p189
        %p374 = pneg %p218
        %p375 = pneg %p215
        %s376 = smul.u32 2, %s30
        %s377 = smul.u32 2, %s31
        %s378 = smul.u32 32, %s31
        %s379 = smul.u32 2, %s30
        %p381 = scmp.eq.s32.totalorder %s31, 0
        // Predicated region
        $region65: #{tpu_custom_call.1} parent=47 // pred_check
          %p382 = pneg %p381
        $region66: #{tpu_custom_call.1} parent=47 // pred_check_branch
          %384 = sbr.rel (%p382) target = $region68
        $region67: #{tpu_custom_call.1} parent=47 // pred_region
          %385 = vst [vmem:[#allocation2] sm:$0xff] 0.0
          %386 = vst [vmem:[#allocation2 + $0x8] sm:$0xff] 0.0
        $region68: #{tpu_custom_call.1} parent=47 // pred_fallthru
          _
        %v387 = vld [vmem:[#allocation2] sm:$0xff]
        %v388 = vld [vmem:[#allocation2 + $0x8] sm:$0xff]
        %v389 = vld [vmem:[%s328] sm:$0xff]
        %v390 = vld [vmem:[%s328 + $0x8] sm:$0xff]
        %v391 = vld [vmem:[%s337] sm:$0xf]
        %v392 = vld [vmem:[%s337 + $0x4] sm:$0xf]
        %v393 = vld [vmem:[%s337 + $0x8] sm:$0xf]
        %v394 = vld [vmem:[%s337 + $0xc] sm:$0xf]
        %v395 = vld [vmem:[%s337 + $0x10] sm:$0xf]
        %v396 = vld [vmem:[%s337 + $0x14] sm:$0xf]
        %v397 = vld [vmem:[%s337 + $0x18] sm:$0xf]
        %v398 = vld [vmem:[%s337 + $0x1c] sm:$0xf]
        %v399 = vld [vmem:[%s337 + $0x20] sm:$0xf]
        %v400 = vld [vmem:[%s337 + $0x24] sm:$0xf]
        %v401 = vld [vmem:[%s337 + $0x28] sm:$0xf]
        %v402 = vld [vmem:[%s337 + $0x2c] sm:$0xf]
        %v403 = vld [vmem:[%s337 + $0x30] sm:$0xf]
        %v404 = vld [vmem:[%s337 + $0x34] sm:$0xf]
        %v405 = vld [vmem:[%s337 + $0x38] sm:$0xf]
        %v406 = vld [vmem:[%s337 + $0x3c] sm:$0xf]
        %v407 = vld [vmem:[%s337 + $0x40] sm:$0xf]
        %v408 = vld [vmem:[%s337 + $0x44] sm:$0xf]
        %v409 = vld [vmem:[%s337 + $0x48] sm:$0xf]
        %v410 = vld [vmem:[%s337 + $0x4c] sm:$0xf]
        %v411 = vld [vmem:[%s337 + $0x50] sm:$0xf]
        %v412 = vld [vmem:[%s337 + $0x54] sm:$0xf]
        %v413 = vld [vmem:[%s337 + $0x58] sm:$0xf]
        %v414 = vld [vmem:[%s337 + $0x5c] sm:$0xf]
        %v415 = vld [vmem:[%s337 + $0x60] sm:$0xf]
        %v416 = vld [vmem:[%s337 + $0x64] sm:$0xf]
        %v417 = vld [vmem:[%s337 + $0x68] sm:$0xf]
        %v418 = vld [vmem:[%s337 + $0x6c] sm:$0xf]
        %v419 = vld [vmem:[%s337 + $0x70] sm:$0xf]
        %v420 = vld [vmem:[%s337 + $0x74] sm:$0xf]
        %v421 = vld [vmem:[%s337 + $0x78] sm:$0xf]
        %v422 = vld [vmem:[%s337 + $0x7c] sm:$0xf]
        %v425 = vunpack.c.l.b16 %v389
        %v426 = vunpack.c.h.b16 %v389
        %v427 = vunpack.c.l.b16 %v390
        %v428 = vunpack.c.h.b16 %v390
        %v429 = vpack.c.b16 %v427, %v425
        %v430 = vpack.c.b16 %v428, %v426
        %v465 = vunpack.c.l.b16 %v391
        %v466 = vunpack.c.l.b16 %v392
        %v467 = vunpack.c.l.b16 %v393
        %v468 = vunpack.c.l.b16 %v394
        %v469 = vunpack.c.l.b16 %v395
        %v470 = vunpack.c.l.b16 %v396
        %v471 = vunpack.c.l.b16 %v397
        %v472 = vunpack.c.l.b16 %v398
        %v473 = vunpack.c.l.b16 %v399
        %v474 = vunpack.c.l.b16 %v400
        %v475 = vunpack.c.l.b16 %v401
        %v476 = vunpack.c.l.b16 %v402
        %v477 = vunpack.c.l.b16 %v403
        %v478 = vunpack.c.l.b16 %v404
        %v479 = vunpack.c.l.b16 %v405
        %v480 = vunpack.c.l.b16 %v406
        %v481 = vunpack.c.l.b16 %v407
        %v482 = vunpack.c.l.b16 %v408
        %v483 = vunpack.c.l.b16 %v409
        %v484 = vunpack.c.l.b16 %v410
        %v485 = vunpack.c.l.b16 %v411
        %v486 = vunpack.c.l.b16 %v412
        %v487 = vunpack.c.l.b16 %v413
        %v488 = vunpack.c.l.b16 %v414
        %v489 = vunpack.c.l.b16 %v415
        %v490 = vunpack.c.l.b16 %v416
        %v491 = vunpack.c.l.b16 %v417
        %v492 = vunpack.c.l.b16 %v418
        %v493 = vunpack.c.l.b16 %v419
        %v494 = vunpack.c.l.b16 %v420
        %v495 = vunpack.c.l.b16 %v421
        %v496 = vunpack.c.l.b16 %v422
        %v497 = vpack.c.b16 %v466, %v465
        %v498 = vpack.c.b16 %v468, %v467
        %v499 = vpack.c.b16 %v470, %v469
        %v500 = vpack.c.b16 %v472, %v471
        %v501 = vpack.c.b16 %v474, %v473
        %v502 = vpack.c.b16 %v476, %v475
        %v503 = vpack.c.b16 %v478, %v477
        %v504 = vpack.c.b16 %v480, %v479
        %v505 = vpack.c.b16 %v482, %v481
        %v506 = vpack.c.b16 %v484, %v483
        %v507 = vpack.c.b16 %v486, %v485
        %v508 = vpack.c.b16 %v488, %v487
        %v509 = vpack.c.b16 %v490, %v489
        %v510 = vpack.c.b16 %v492, %v491
        %v511 = vpack.c.b16 %v494, %v493
        %v512 = vpack.c.b16 %v496, %v495
        %529 = vmatprep.subr.bf16.mxu0 0
        %530 = vmatpush1.bf16.msra.mxu0 %v497
        %531 = vmatprep.subr.bf16.mxu0 0
        %532 = vmatpush1.bf16.msra.mxu0 %v498
        %533 = vmatprep.subr.bf16.mxu0 0
        %534 = vmatpush1.bf16.msra.mxu0 %v499
        %535 = vmatprep.subr.bf16.mxu0 0
        %536 = vmatpush1.bf16.msra.mxu0 %v500
        %537 = vmatprep.subr.bf16.mxu0 0
        %538 = vmatpush1.bf16.msra.mxu0 %v501
        %539 = vmatprep.subr.bf16.mxu0 0
        %540 = vmatpush1.bf16.msra.mxu0 %v502
        %541 = vmatprep.subr.bf16.mxu0 0
        %542 = vmatpush1.bf16.msra.mxu0 %v503
        %543 = vmatprep.subr.bf16.mxu0 0
        %544 = vmatpush1.bf16.msra.mxu0 %v504
        %545 = vmatprep.subr.bf16.mxu0 0
        %546 = vmatpush1.bf16.msra.mxu0 %v505
        %547 = vmatprep.subr.bf16.mxu0 0
        %548 = vmatpush1.bf16.msra.mxu0 %v506
        %549 = vmatprep.subr.bf16.mxu0 0
        %550 = vmatpush1.bf16.msra.mxu0 %v507
        %551 = vmatprep.subr.bf16.mxu0 0
        %552 = vmatpush1.bf16.msra.mxu0 %v508
        %553 = vmatprep.subr.bf16.mxu0 0
        %554 = vmatpush1.bf16.msra.mxu0 %v509
        %555 = vmatprep.subr.bf16.mxu0 0
        %556 = vmatpush1.bf16.msra.mxu0 %v510
        %557 = vmatprep.subr.bf16.mxu0 0
        %558 = vmatpush1.bf16.msra.mxu0 %v511
        %559 = vmatprep.subr.bf16.mxu0 0
        %560 = vmatpush1.bf16.msra.mxu0 %v512
        %561 = vmatprep.mubr.bf16.mxu0 %v430
        %562 = vmatmul.mubr.bf16.gmra.mrb[0].mxu0 %v429
        %v563 = vpop.f32.mrb[0].mxu0
        %v564 = vadd.f32 0.0, %v563
        %v565 = vpop.f32.mrb[0].mxu0
        %v566 = vpop.f32.mrb[0].mxu0
        %v567 = vadd.f32 0.0, %v566
        %v568 = vpop.f32.mrb[0].mxu0
        %569 = vdwg.mxu0
        %v570 = vadd.f32 %v387, %v564
        %v571 = vadd.f32 %v388, %v567
        %572 = vst [vmem:[#allocation2] sm:$0xff] %v570
        %573 = vst [vmem:[#allocation2 + $0x8] sm:$0xff] %v571
        %p574 = scmp.eq.s32.totalorder %s31, 1
        // Predicated region
        $region69: #{tpu_custom_call.1} parent=47 // pred_check
          %p575 = pneg %p574
        $region70: #{tpu_custom_call.1} parent=47 // pred_check_branch
          %577 = sbr.rel (%p575) target = $region72
        $region71: #{tpu_custom_call.1} parent=47 // pred_region
          %v578 = vld [vmem:[#allocation2] sm:$0xff]
          %v579 = vld [vmem:[#allocation2 + $0x8] sm:$0xff]
          %v580 = vld [vmem:[%s2] sm:$0x1]
          %v582 = vlaneseq
          %v583 = vshrl.u32 %v582, 7
          %v584 = vsub.s32 0, %v583
          %v585 = vrot.slane %v580, %v584
          %v587 = vadd.f32 %v578, %v585
          %v588 = vadd.f32 %v579, %v585
          %v589 = vmax.f32 %v587, 0.0
          %v590 = vmax.f32 %v588, 0.0
          %v591 = vpack.c.bf16 %v590, %v589
          %v592 = vld [vmem:[#allocation8] sm:$0xf]
          %v593 = vld [vmem:[#allocation8 + $0x4] sm:$0xf]
          %v594 = vld [vmem:[#allocation8 + $0x8] sm:$0xf]
          %v595 = vld [vmem:[#allocation8 + $0xc] sm:$0xf]
          %v596 = vld [vmem:[#allocation8 + $0x10] sm:$0xf]
          %v597 = vld [vmem:[#allocation8 + $0x14] sm:$0xf]
          %v598 = vld [vmem:[#allocation8 + $0x18] sm:$0xf]
          %v599 = vld [vmem:[#allocation8 + $0x1c] sm:$0xf]
          %v600 = vld [vmem:[#allocation8 + $0x20] sm:$0xf]
          %v601 = vld [vmem:[#allocation8 + $0x24] sm:$0xf]
          %v602 = vld [vmem:[#allocation8 + $0x28] sm:$0xf]
          %v603 = vld [vmem:[#allocation8 + $0x2c] sm:$0xf]
          %v604 = vld [vmem:[#allocation8 + $0x30] sm:$0xf]
          %v605 = vld [vmem:[#allocation8 + $0x34] sm:$0xf]
          %v606 = vld [vmem:[#allocation8 + $0x38] sm:$0xf]
          %v607 = vld [vmem:[#allocation8 + $0x3c] sm:$0xf]
          %v608 = vld [vmem:[%s4] sm:$0x1]
          %v610 = vlaneseq
          %v611 = vshrl.u32 %v610, 7
          %v612 = vsub.s32 0, %v611
          %v613 = vrot.slane %v608, %v612
          %v631 = vunpack.c.l.b16 %v592
          %v632 = vunpack.c.l.b16 %v593
          %v633 = vunpack.c.l.b16 %v594
          %v634 = vunpack.c.l.b16 %v595
          %v635 = vunpack.c.l.b16 %v596
          %v636 = vunpack.c.l.b16 %v597
          %v637 = vunpack.c.l.b16 %v598
          %v638 = vunpack.c.l.b16 %v599
          %v639 = vunpack.c.l.b16 %v600
          %v640 = vunpack.c.l.b16 %v601
          %v641 = vunpack.c.l.b16 %v602
          %v642 = vunpack.c.l.b16 %v603
          %v643 = vunpack.c.l.b16 %v604
          %v644 = vunpack.c.l.b16 %v605
          %v645 = vunpack.c.l.b16 %v606
          %v646 = vunpack.c.l.b16 %v607
          %v647 = vpack.c.b16 %v632, %v631
          %v648 = vpack.c.b16 %v634, %v633
          %v649 = vpack.c.b16 %v636, %v635
          %v650 = vpack.c.b16 %v638, %v637
          %v651 = vpack.c.b16 %v640, %v639
          %v652 = vpack.c.b16 %v642, %v641
          %v653 = vpack.c.b16 %v644, %v643
          %v654 = vpack.c.b16 %v646, %v645
          %663 = vmatprep.subr.bf16.mxu0 0
          %664 = vmatpush1.bf16.msra.mxu0 %v647
          %665 = vmatprep.subr.bf16.mxu0 0
          %666 = vmatpush1.bf16.msra.mxu0 %v648
          %667 = vmatprep.subr.bf16.mxu0 0
          %668 = vmatpush1.bf16.msra.mxu0 %v649
          %669 = vmatprep.subr.bf16.mxu0 0
          %670 = vmatpush1.bf16.msra.mxu0 %v650
          %671 = vmatprep.subr.bf16.mxu0 0
          %672 = vmatpush1.bf16.msra.mxu0 %v651
          %673 = vmatprep.subr.bf16.mxu0 0
          %674 = vmatpush1.bf16.msra.mxu0 %v652
          %675 = vmatprep.subr.bf16.mxu0 0
          %676 = vmatpush1.bf16.msra.mxu0 %v653
          %677 = vmatprep.subr.bf16.mxu0 0
          %678 = vmatpush1.bf16.msra.mxu0 %v654
          %679 = vmatprep.subr.bf16.mxu0 0
          %680 = vmatpush1.bf16.msra.mxu0 0
          %681 = vmatprep.subr.bf16.mxu0 0
          %682 = vmatpush1.bf16.msra.mxu0 0
          %683 = vmatprep.subr.bf16.mxu0 0
          %684 = vmatpush1.bf16.msra.mxu0 0
          %685 = vmatprep.subr.bf16.mxu0 0
          %686 = vmatpush1.bf16.msra.mxu0 0
          %687 = vmatprep.subr.bf16.mxu0 0
          %688 = vmatpush1.bf16.msra.mxu0 0
          %689 = vmatprep.subr.bf16.mxu0 0
          %690 = vmatpush1.bf16.msra.mxu0 0
          %691 = vmatprep.subr.bf16.mxu0 0
          %692 = vmatpush1.bf16.msra.mxu0 0
          %693 = vmatprep.subr.bf16.mxu0 0
          %694 = vmatpush1.bf16.msra.mxu0 0
          %695 = vmatprep.mubr.bf16.mxu0 0
          %696 = vmatmul.mubr.bf16.gmra.mrb[0].mxu0 %v591
          %v697 = vpop.f32.mrb[0].mxu0
          %v698 = vadd.f32 %v613, %v697
          %v699 = vpop.f32.mrb[0].mxu0
          %v700 = vpop.f32.mrb[0].mxu0
          %v701 = vadd.f32 %v613, %v700
          %v702 = vpop.f32.mrb[0].mxu0
          %703 = vdwg.mxu0
          %v704 = vmax.f32 %v698, 0.0
          %v705 = vmax.f32 %v701, 0.0
          %v706 = vpack.c.bf16 %v705, %v704
          %v707 = vld [vmem:[#allocation9] sm:$0xf]
          %v708 = vld [vmem:[#allocation9 + $0x4] sm:$0xf]
          %v709 = vld [vmem:[#allocation9 + $0x8] sm:$0xf]
          %v710 = vld [vmem:[#allocation9 + $0xc] sm:$0xf]
          %v711 = vld [vmem:[#allocation9 + $0x10] sm:$0xf]
          %v712 = vld [vmem:[#allocation9 + $0x14] sm:$0xf]
          %v713 = vld [vmem:[#allocation9 + $0x18] sm:$0xf]
          %v714 = vld [vmem:[#allocation9 + $0x1c] sm:$0xf]
          %v715 = vld [vmem:[#allocation9 + $0x20] sm:$0xf]
          %v716 = vld [vmem:[#allocation9 + $0x24] sm:$0xf]
          %v717 = vld [vmem:[#allocation9 + $0x28] sm:$0xf]
          %v718 = vld [vmem:[#allocation9 + $0x2c] sm:$0xf]
          %v719 = vld [vmem:[#allocation9 + $0x30] sm:$0xf]
          %v720 = vld [vmem:[#allocation9 + $0x34] sm:$0xf]
          %v721 = vld [vmem:[#allocation9 + $0x38] sm:$0xf]
          %v722 = vld [vmem:[#allocation9 + $0x3c] sm:$0xf]
          %v723 = vld [vmem:[%s6] sm:$0x1]
          %v725 = vlaneseq
          %v726 = vshrl.u32 %v725, 7
          %v727 = vsub.s32 0, %v726
          %v728 = vrot.slane %v723, %v727
          %v746 = vunpack.c.l.b16 %v707
          %v747 = vunpack.c.l.b16 %v708
          %v748 = vunpack.c.l.b16 %v709
          %v749 = vunpack.c.l.b16 %v710
          %v750 = vunpack.c.l.b16 %v711
          %v751 = vunpack.c.l.b16 %v712
          %v752 = vunpack.c.l.b16 %v713
          %v753 = vunpack.c.l.b16 %v714
          %v754 = vunpack.c.l.b16 %v715
          %v755 = vunpack.c.l.b16 %v716
          %v756 = vunpack.c.l.b16 %v717
          %v757 = vunpack.c.l.b16 %v718
          %v758 = vunpack.c.l.b16 %v719
          %v759 = vunpack.c.l.b16 %v720
          %v760 = vunpack.c.l.b16 %v721
          %v761 = vunpack.c.l.b16 %v722
          %v762 = vpack.c.b16 %v747, %v746
          %v763 = vpack.c.b16 %v749, %v748
          %v764 = vpack.c.b16 %v751, %v750
          %v765 = vpack.c.b16 %v753, %v752
          %v766 = vpack.c.b16 %v755, %v754
          %v767 = vpack.c.b16 %v757, %v756
          %v768 = vpack.c.b16 %v759, %v758
          %v769 = vpack.c.b16 %v761, %v760
          %778 = vmatprep.subr.bf16.mxu0 0
          %779 = vmatpush1.bf16.msra.mxu0 %v762
          %780 = vmatprep.subr.bf16.mxu0 0
          %781 = vmatpush1.bf16.msra.mxu0 %v763
          %782 = vmatprep.subr.bf16.mxu0 0
          %783 = vmatpush1.bf16.msra.mxu0 %v764
          %784 = vmatprep.subr.bf16.mxu0 0
          %785 = vmatpush1.bf16.msra.mxu0 %v765
          %786 = vmatprep.subr.bf16.mxu0 0
          %787 = vmatpush1.bf16.msra.mxu0 %v766
          %788 = vmatprep.subr.bf16.mxu0 0
          %789 = vmatpush1.bf16.msra.mxu0 %v767
          %790 = vmatprep.subr.bf16.mxu0 0
          %791 = vmatpush1.bf16.msra.mxu0 %v768
          %792 = vmatprep.subr.bf16.mxu0 0
          %793 = vmatpush1.bf16.msra.mxu0 %v769
          %794 = vmatprep.subr.bf16.mxu0 0
          %795 = vmatpush1.bf16.msra.mxu0 0
          %796 = vmatprep.subr.bf16.mxu0 0
          %797 = vmatpush1.bf16.msra.mxu0 0
          %798 = vmatprep.subr.bf16.mxu0 0
          %799 = vmatpush1.bf16.msra.mxu0 0
          %800 = vmatprep.subr.bf16.mxu0 0
          %801 = vmatpush1.bf16.msra.mxu0 0
          %802 = vmatprep.subr.bf16.mxu0 0
          %803 = vmatpush1.bf16.msra.mxu0 0
          %804 = vmatprep.subr.bf16.mxu0 0
          %805 = vmatpush1.bf16.msra.mxu0 0
          %806 = vmatprep.subr.bf16.mxu0 0
          %807 = vmatpush1.bf16.msra.mxu0 0
          %808 = vmatprep.subr.bf16.mxu0 0
          %809 = vmatpush1.bf16.msra.mxu0 0
          %810 = vmatprep.mubr.bf16.mxu0 0
          %811 = vmatmul.mubr.bf16.gmra.mrb[0].mxu0 %v706
          %v812 = vpop.f32.mrb[0].mxu0
          %v813 = vadd.f32 %v728, %v812
          %v814 = vpop.f32.mrb[0].mxu0
          %v815 = vpop.f32.mrb[0].mxu0
          %v816 = vadd.f32 %v728, %v815
          %v817 = vpop.f32.mrb[0].mxu0
          %818 = vdwg.mxu0
          %819 = vst [vmem:[#allocation11] sm:$0xff] %v813
          %820 = vst [vmem:[#allocation11 + $0x8] sm:$0xff] %v816
        $region72: #{tpu_custom_call.1} parent=47 // pred_fallthru
          _
        // Predicated region
        $region73: #{tpu_custom_call.1} parent=47 // pred_check
          %p821 = pneg %p215
        $region74: #{tpu_custom_call.1} parent=47 // pred_check_branch
          %823 = sbr.rel (%p821) target = $region76
        $region75: #{tpu_custom_call.1} parent=47 // pred_region
          %s824 = smul.u32 2, %s30
          %s826 = ssub.s32 256, 256
          %827 = vsyncadd [#allocation5], %s826
          %s828 = smul.addr %s824, 128
          %s829 = scalar_lea.hbm %s7, %s828
          %s830 = sshll.u32 [#allocation11], 4
          %s831 = int_to_ptr.vmem [resolvable:$true] %s830
          %836 = dma.vmem_to_hbm [thread:$0]  %s831, 256, %s829, [#allocation5], 128, 128, 8
        $region76: #{tpu_custom_call.1} parent=47 // pred_fallthru
          _
        // Predicated region
        $region77: #{tpu_custom_call.1} parent=47 // pred_check
          %p837 = pneg %p215
        $region78: #{tpu_custom_call.1} parent=47 // pred_check_branch
          %839 = sbr.rel (%p837) target = $region80
        $region79: #{tpu_custom_call.1} parent=47 // pred_region
          %840 = dma.done [#allocation5], 256
        $region80: #{tpu_custom_call.1} parent=47 // pred_fallthru
          _
      $region48: #{tpu_custom_call.1} parent=5 // pred_fallthru
        _
      %p841 = scmp.le.s32.totalorder 2, %s21
      // Predicated region
      $region81: #{tpu_custom_call.1} parent=5 // pred_check
        %p842 = pneg %p841
      $region82: #{tpu_custom_call.1} parent=5 // pred_check_branch
        %844 = sbr.rel (%p842) target = $region84
      $region83: #{tpu_custom_call.1} parent=5 // pred_region
        %s845 = ssub.s32 %s21, 2
      $region84: #{tpu_custom_call.1} parent=5 // pred_fallthru
        _
    $region6: #{tpu_custom_call.1} parent=1 // loop_footer
      %s25 = sadd.s32 1, %s21
    $region7: #{tpu_custom_call.1} parent=1 // loop_footer_branch
      %20 = sbr.rel target = $region3
    $region8: #{tpu_custom_call.1} parent=1 // loop_exit
      _
    %846 = vsyncpa [#allocation4], 1
    %s847 = scalar_lea.sflag [#allocation4], 1
    %848 = vsyncpa %s847, 1
    %849 = vsyncpa [#allocation7], 1
    %s850 = scalar_lea.sflag [#allocation7], 1
    %851 = vsyncpa %s850, 1
    %852 = vsyncpa [#allocation10], 1
    %853 = vsyncpa [#allocation5], 1
    %s854 = scalar_lea.sflag [#allocation5], 1
    %855 = vsyncpa %s854, 1

</llo_original>
